<compile_context>
chip_gen: v6e
topology: v6e:2x2x1
jax: 0.10.0
libtpu: 0.0.40
codegen_flags: <defaults>
</compile_context>

<pallas_src>
import jax
import jax.numpy as jnp
from jax import lax
from jax.experimental import pallas as pl
from jax.experimental.pallas import tpu as pltpu

IN_DIM, H1, H2, OUT_DIM = 50, 128, 64, 1


def _round_up(n, m):
    return ((n + m - 1) // m) * m


def mlp_kernel(x_ref, w1_ref, b1_ref, w2t_ref, b2_ref, w3_ref, b3_ref, o_ref):
    # fc1 on the MXU: cast the streamed f32 tile to bf16 on the VPU (the HBM stream
    # stays raw, unpadded f32); f32 accumulation; bias + ReLU in f32.
    x = x_ref[...].astype(w1_ref.dtype)                                    # (bm, 50) bf16
    h1 = jnp.dot(x, w1_ref[...], preferred_element_type=jnp.float32)       # (bm, 128) f32
    h1 = jnp.maximum(h1 + b1_ref[...], 0.0)

    # fc2 computed *transposed*: contract the 128-dim of w2t (64, 128) with the 128-dim
    # of h1 (bm, 128) -> h2t (64, bm).  This is the standard "NT" dot_general pattern,
    # and it puts the batch on the lane axis so everything downstream (and the output
    # store) is lane-dense.
    h2t = lax.dot_general(
        w2t_ref[...], h1.astype(w2t_ref.dtype),
        dimension_numbers=(((1,), (1,)), ((), ())),
        preferred_element_type=jnp.float32)                                # (64, bm) f32
    h2t = jnp.maximum(h2t + b2_ref[...], 0.0)

    # fc3 (out_features = 1): VPU multiply + cross-sublane reduce, fully in f32 — no
    # degenerate 1-wide MXU matmul, and the result is already a lane-dense row.
    z = jnp.sum(h2t * w3_ref[...], axis=0, keepdims=True) + b3_ref[...]    # (1, bm) f32

    o_ref[0] = jax.nn.sigmoid(z).astype(o_ref.dtype)                       # dense row store


def toy_model_forward(x, params, *, bm=2048, matmul_dtype=jnp.bfloat16):
    """Fused MLP forward in one Pallas kernel, tiled over the batch axis.

    x: (B, 50) f32.  params: (w1 (50,128), b1 (1,128), w2 (128,64), b2 (1,64),
    w3 (1,64) [PyTorch (out,in) layout], b3 (1,1)), all f32.  Returns (B, 1) f32.
    """
    w1, b1, w2, b2, w3, b3 = params
    B = x.shape[0]

    # Tile selection: big tiles amortize the ~0.35us/step pipeline overhead.
    #   * tiny batches (<=128 rows): one small tile, rounded to a sublane multiple;
    #   * otherwise keep bm a multiple of 128 (lane-dense output) and cap it so the
    #     grid has >= 2 steps, letting v7x shard the parallel axis over its 2 TCs.
    if B <= 128:
        bm = _round_up(max(B, 1), 8)
    else:
        bm = max(128, min(bm, _round_up(B, 128)))
        bm = min(bm, _round_up(pl.cdiv(B, 2), 128))
    num_tiles = pl.cdiv(B, bm)

    # Only the (tiny) weights are prepared in the wrapper; x is passed untouched.
    w1_c = w1.astype(matmul_dtype)                 # (50, 128) bf16
    w2t_c = w2.T.astype(matmul_dtype)              # (64, 128) bf16  (PyTorch (out,in))
    b2_col = b2.reshape(H2, OUT_DIM * 0 + 1)       # (64, 1) f32
    w3_col = w3.reshape(H2, 1)                     # (64, 1) f32
    b3_sc = b3.reshape(1, 1)                       # (1, 1)  f32

    def resident(shape):
        return pl.BlockSpec(shape, lambda i, _s=len(shape): (0,) * _s)

    rows = num_tiles * bm
    flops = 2 * rows * (IN_DIM * H1 + H1 * H2 + H2)
    bytes_accessed = (
        B * IN_DIM * 4                             # x: single raw f32 pass
        + (IN_DIM * H1 + H1 * H2) * 2              # bf16 weights (resident)
        + (H1 + H2 + H2 + 1) * 4                   # f32 biases + w3
        + rows * 4                                 # output
    )

    out = pl.pallas_call(
        mlp_kernel,
        out_shape=jax.ShapeDtypeStruct((num_tiles, 1, bm), jnp.float32),
        grid_spec=pltpu.PrefetchScalarGridSpec(
            num_scalar_prefetch=0,
            grid=(num_tiles,),
            in_specs=[
                pl.BlockSpec((bm, IN_DIM), lambda i: (i, 0)),  # x tile (only streamed op)
                resident((IN_DIM, H1)), resident((1, H1)),     # fc1 (resident in VMEM)
                resident((H2, H1)), resident((H2, 1)),         # fc2 (w2 transposed, b2 col)
                resident((H2, 1)), resident((1, 1)),           # fc3 (w3 col, b3)
            ],
            out_specs=pl.BlockSpec((1, 1, bm), lambda i: (i, 0, 0)),  # lane-dense rows
        ),
        compiler_params=pltpu.CompilerParams(
            dimension_semantics=("parallel",),
        ),
        cost_estimate=pl.CostEstimate(
            flops=flops,
            transcendentals=2 * rows,              # exp + reciprocal per sigmoid
            bytes_accessed=bytes_accessed,
        ),
    )(x, w1_c, b1, w2t_c, b2_col, w3_col, b3_sc)

    # (num_tiles, 1, bm) flattens row-major in batch order; drop ragged tail rows.
    return out.reshape(num_tiles * bm, OUT_DIM)[:B]


def init_params(key):
    """Deterministic synthetic parameters matching nn.Linear shapes.

    w1/w2 stored as (in, out) so the math is x @ W; w3 kept in PyTorch's
    (out, in) = (1, 64) layout.
    """
    ks = jax.random.split(key, 6)
    w1 = jax.random.normal(ks[0], (IN_DIM, H1), jnp.float32) * 0.1
    b1 = jax.random.normal(ks[1], (1, H1), jnp.float32) * 0.1
    w2 = jax.random.normal(ks[2], (H1, H2), jnp.float32) * 0.1
    b2 = jax.random.normal(ks[3], (1, H2), jnp.float32) * 0.1
    w3 = jax.random.normal(ks[4], (1, H2), jnp.float32) * 0.1
    b3 = jax.random.normal(ks[5], (1, OUT_DIM), jnp.float32) * 0.1
    return w1, b1, w2, b2, w3, b3


def reference_forward(x, params):
    """Pure-f32 JAX reference, identical semantics to ToyModel.forward."""
    w1, b1, w2, b2, w3, b3 = params
    h = jnp.maximum(x @ w1 + b1, 0.0)
    h = jnp.maximum(h @ w2 + b2, 0.0)
    return jax.nn.sigmoid(h @ w3.T + b3)


if __name__ == "__main__":
    key = jax.random.PRNGKey(0)
    kx, kp, kx2 = jax.random.split(key, 3)
    params = init_params(kp)

    # Small batch: single tile, exact block.
    B = 8
    x = jax.random.normal(kx, (B, IN_DIM), jnp.float32)
    out = jax.block_until_ready(toy_model_forward(x, params))
    ref = reference_forward(x, params)
    assert out.shape == (B, OUT_DIM)
    assert jnp.allclose(out, ref, atol=2e-2, rtol=2e-2), "mismatch vs reference (B=8)"

    # Ragged multi-tile batch: exercises >=2 grid steps and a partial boundary tile.
    B2 = 300
    x2 = jax.random.normal(kx2, (B2, IN_DIM), jnp.float32)
    out2 = jax.block_until_ready(toy_model_forward(x2, params))
    ref2 = reference_forward(x2, params)
    assert out2.shape == (B2, OUT_DIM)
    assert jnp.allclose(out2, ref2, atol=2e-2, rtol=2e-2), "mismatch vs reference (B=300)"

    print("KERNEL_OK")
</pallas_src>

<mosaic_0001>
module attributes {stable_mosaic.version = 11 : i64} {
  func.func @mlp_kernel(%arg0: i32, %arg1: memref<8x50xf32, #tpu.memory_space<vmem>>, %arg2: memref<50x128xbf16, #tpu.memory_space<vmem>>, %arg3: memref<1x128xf32, #tpu.memory_space<vmem>>, %arg4: memref<64x128xbf16, #tpu.memory_space<vmem>>, %arg5: memref<64x1xf32, #tpu.memory_space<vmem>>, %arg6: memref<64x1xf32, #tpu.memory_space<vmem>>, %arg7: memref<1x1xf32, #tpu.memory_space<vmem>>, %arg8: memref<1x1x8xf32, #tpu.memory_space<vmem>>) attributes {dimension_semantics = [#tpu.dimension_semantics<parallel>], iteration_bounds = array<i64: 1>, scalar_prefetch = 0 : i64, scratch_operands = 0 : i64, tpu.core_type = #tpu.core_type<tc>, window_params = [{transform_indices = @transform_0, window_bounds = array<i64: 8, 50>}, {pipeline_mode = #tpu.pipeline_mode<synchronous>, transform_indices = @transform_1, window_bounds = array<i64: 50, 128>}, {pipeline_mode = #tpu.pipeline_mode<synchronous>, transform_indices = @transform_2, window_bounds = array<i64: 1, 128>}, {pipeline_mode = #tpu.pipeline_mode<synchronous>, transform_indices = @transform_3, window_bounds = array<i64: 64, 128>}, {pipeline_mode = #tpu.pipeline_mode<synchronous>, transform_indices = @transform_4, window_bounds = array<i64: 64, 1>}, {pipeline_mode = #tpu.pipeline_mode<synchronous>, transform_indices = @transform_5, window_bounds = array<i64: 64, 1>}, {pipeline_mode = #tpu.pipeline_mode<synchronous>, transform_indices = @transform_6, window_bounds = array<i64: 1, 1>}, {transform_indices = @transform_7, window_bounds = array<i64: 1, 1, 8>}]} {
    %c0 = arith.constant 0 : index
    %c0_0 = arith.constant 0 : index
    %0 = vector.load %arg1[%c0, %c0_0] : memref<8x50xf32, #tpu.memory_space<vmem>>, vector<8x50xf32>
    %1 = arith.truncf %0 : vector<8x50xf32> to vector<8x50xbf16>
    %c0_1 = arith.constant 0 : index
    %c0_2 = arith.constant 0 : index
    %2 = vector.load %arg2[%c0_1, %c0_2] : memref<50x128xbf16, #tpu.memory_space<vmem>>, vector<50x128xbf16>
    %cst = arith.constant dense<0.000000e+00> : vector<8x128xf32>
    %3 = tpu.matmul %1, %2, %cst {dimension_numbers = #tpu.dot_dimension_numbers<[1], [0], [0], [1], [0, 0, 1, 1], [], []>} : vector<8x50xbf16>, vector<50x128xbf16>, vector<8x128xf32> -> vector<8x128xf32>
    %c0_3 = arith.constant 0 : index
    %c0_4 = arith.constant 0 : index
    %4 = vector.load %arg3[%c0_3, %c0_4] : memref<1x128xf32, #tpu.memory_space<vmem>>, vector<1x128xf32>
    %5 = vector.broadcast %4 : vector<1x128xf32> to vector<8x128xf32>
    %6 = arith.addf %3, %5 : vector<8x128xf32>
    %cst_5 = arith.constant 0.000000e+00 : f32
    %7 = vector.broadcast %cst_5 : f32 to vector<8x128xf32>
    %8 = arith.maximumf %6, %7 : vector<8x128xf32>
    %c0_6 = arith.constant 0 : index
    %c0_7 = arith.constant 0 : index
    %9 = vector.load %arg4[%c0_6, %c0_7] : memref<64x128xbf16, #tpu.memory_space<vmem>>, vector<64x128xbf16>
    %10 = arith.truncf %8 : vector<8x128xf32> to vector<8x128xbf16>
    %cst_8 = arith.constant dense<0.000000e+00> : vector<64x8xf32>
    %11 = tpu.matmul %9, %10, %cst_8 {dimension_numbers = #tpu.dot_dimension_numbers<[1], [1], [0], [0], [0, 0, 1, 0], [], []>} : vector<64x128xbf16>, vector<8x128xbf16>, vector<64x8xf32> -> vector<64x8xf32>
    %c0_9 = arith.constant 0 : index
    %c0_10 = arith.constant 0 : index
    %12 = vector.load %arg5[%c0_9, %c0_10] : memref<64x1xf32, #tpu.memory_space<vmem>>, vector<64x1xf32>
    %13 = vector.broadcast %12 : vector<64x1xf32> to vector<64x8xf32>
    %14 = arith.addf %11, %13 : vector<64x8xf32>
    %cst_11 = arith.constant 0.000000e+00 : f32
    %15 = vector.broadcast %cst_11 : f32 to vector<64x8xf32>
    %16 = arith.maximumf %14, %15 : vector<64x8xf32>
    %c0_12 = arith.constant 0 : index
    %c0_13 = arith.constant 0 : index
    %17 = vector.load %arg6[%c0_12, %c0_13] : memref<64x1xf32, #tpu.memory_space<vmem>>, vector<64x1xf32>
    %18 = vector.broadcast %17 : vector<64x1xf32> to vector<64x8xf32>
    %19 = arith.mulf %16, %18 : vector<64x8xf32>
    %cst_14 = arith.constant dense<0.000000e+00> : vector<8xf32>
    %20 = vector.multi_reduction <add>, %19, %cst_14 [0] : vector<64x8xf32> to vector<8xf32>
    %21 = vector.shape_cast %20 : vector<8xf32> to vector<1x8xf32>
    %c0_15 = arith.constant 0 : index
    %c0_16 = arith.constant 0 : index
    %22 = vector.load %arg7[%c0_15, %c0_16] : memref<1x1xf32, #tpu.memory_space<vmem>>, vector<1x1xf32>
    %23 = vector.broadcast %22 : vector<1x1xf32> to vector<1x8xf32>
    %24 = arith.addf %21, %23 : vector<1x8xf32>
    %25 = arith.negf %24 : vector<1x8xf32>
    %26 = math.exp %25 : vector<1x8xf32>
    %cst_17 = arith.constant 1.000000e+00 : f32
    %27 = vector.broadcast %cst_17 : f32 to vector<1x8xf32>
    %28 = arith.addf %27, %26 : vector<1x8xf32>
    %29 = arith.divf %27, %28 : vector<1x8xf32>
    %c0_18 = arith.constant 0 : index
    %c0_19 = arith.constant 0 : index
    %c0_20 = arith.constant 0 : index
    %30 = vector.load %arg8[%c0_18, %c0_19, %c0_20] : memref<1x1x8xf32, #tpu.memory_space<vmem>>, vector<1x1x8xf32>
    %31 = vector.shape_cast %30 : vector<1x1x8xf32> to vector<1x8xf32>
    %32 = vector.shape_cast %29 : vector<1x8xf32> to vector<1x1x8xf32>
    tpu.vector_store %arg8[%c0_18, %c0_19, %c0_20], %32 {strides = array<i32>} : memref<1x1x8xf32, #tpu.memory_space<vmem>>, vector<1x1x8xf32>,
    return
  }
  func.func @transform_0(%arg0: i32) -> (i32, i32) {
    %c0_i32 = arith.constant 0 : i32
    %c0_i32_0 = arith.constant 0 : i32
    return %arg0, %c0_i32 : i32, i32
  }
  func.func @transform_1(%arg0: i32) -> (i32, i32) {
    %c0_i32 = arith.constant 0 : i32
    %c0_i32_0 = arith.constant 0 : i32
    %c0_i32_1 = arith.constant 0 : i32
    return %c0_i32, %c0_i32_0 : i32, i32
  }
  func.func @transform_2(%arg0: i32) -> (i32, i32) {
    %c0_i32 = arith.constant 0 : i32
    %c0_i32_0 = arith.constant 0 : i32
    %c0_i32_1 = arith.constant 0 : i32
    return %c0_i32, %c0_i32_0 : i32, i32
  }
  func.func @transform_3(%arg0: i32) -> (i32, i32) {
    %c0_i32 = arith.constant 0 : i32
    %c0_i32_0 = arith.constant 0 : i32
    %c0_i32_1 = arith.constant 0 : i32
    return %c0_i32, %c0_i32_0 : i32, i32
  }
  func.func @transform_4(%arg0: i32) -> (i32, i32) {
    %c0_i32 = arith.constant 0 : i32
    %c0_i32_0 = arith.constant 0 : i32
    %c0_i32_1 = arith.constant 0 : i32
    return %c0_i32, %c0_i32_0 : i32, i32
  }
  func.func @transform_5(%arg0: i32) -> (i32, i32) {
    %c0_i32 = arith.constant 0 : i32
    %c0_i32_0 = arith.constant 0 : i32
    %c0_i32_1 = arith.constant 0 : i32
    return %c0_i32, %c0_i32_0 : i32, i32
  }
  func.func @transform_6(%arg0: i32) -> (i32, i32) {
    %c0_i32 = arith.constant 0 : i32
    %c0_i32_0 = arith.constant 0 : i32
    %c0_i32_1 = arith.constant 0 : i32
    return %c0_i32, %c0_i32_0 : i32, i32
  }
  func.func @transform_7(%arg0: i32) -> (i32, i32, i32) {
    %c0_i32 = arith.constant 0 : i32
    %c0_i32_0 = arith.constant 0 : i32
    %c0_i32_1 = arith.constant 0 : i32
    return %arg0, %c0_i32, %c0_i32_0 : i32, i32, i32
  }
}

</mosaic_0001>

<llo_original>
// kernel: tpu_custom_call.1
$region0: #{tpu_custom_call.1}
  #allocation0 [shape = 'u32[]', space=smem, size = 0x4, offset = 0x4, fixed_abs, tag = 'smem constant byte address 0x4 - core index']
  #allocation1 [shape = 'u32[144,128]{1,0:T(1,128)}', space=vmem, size = 0x12000, scoped, tag = 'internal scratch']
  #allocation2 [shape = 'f32[1,1]{1,0:T(1,128)S(1)}', space=vmem, size = 0x200, scoped, tag = 'scoped memory for tpu_custom_call.1']
  %s0 = inlined_call_operand.vmem [shape: f32[8,50], index: 0, kind: input, shape index: {}]
  %s1 = inlined_call_operand.vmem [shape: bf16[50,128], index: 1, kind: input, shape index: {}]
  %s2 = inlined_call_operand.vmem [shape: f32[1,128], index: 2, kind: input, shape index: {}]
  %s3 = inlined_call_operand.vmem [shape: bf16[64,128], index: 3, kind: input, shape index: {}]
  %s4 = inlined_call_operand.vmem [shape: f32[64,1], index: 4, kind: input, shape index: {}]
  %s5 = inlined_call_operand.vmem [shape: f32[64,1], index: 5, kind: input, shape index: {}]
  %s6 = inlined_call_operand.<no memory space> [shape: f32[1,1], index: 6, kind: input, shape index: {}]
  %s7 = inlined_call_operand.hbm [shape: f32[1,1,8], index: 7, kind: output, shape index: {}]
  %s8 = sld [smem:[#allocation0]]
  $region38: #{tpu_custom_call.1} parent=0
    _
  %s10 = ssub.s32 1, %s8
  %s11 = scalar_select 0, %s10, %s8
  %v12 = vstv %s6
  %13 = vst [vmem:[#allocation2] sm:$0x1] %v12
  $region1: #{tpu_custom_call.1} parent=0
    #allocation3 [shape = 'u8[512]{0}', space=vmem, size = 0x400, scoped, tag = 'output window, operand 0, single buffered']
    #allocation4 [shape = 's32[1]{0}', space=sflag, size = 0x4, scoped, tag = 'scoped memory for tpu_custom_call.1']
    %14 = vsyncpa [#allocation4], 0
    // Predicated region
    $region2: #{tpu_custom_call.1} parent=1 // pred_check
      _
    $region3: #{tpu_custom_call.1} parent=1 // pred_check_branch
      %16 = sbr.rel (0) target = $region5
    $region4: #{tpu_custom_call.1} parent=1 // pred_region
      _
    $region5: #{tpu_custom_call.1} parent=1 // pred_fallthru
      _
    // Predicated region
    $region6: #{tpu_custom_call.1} parent=1 // pred_check
      _
    $region7: #{tpu_custom_call.1} parent=1 // pred_check_branch
      %18 = sbr.rel (0) target = $region9
    $region8: #{tpu_custom_call.1} parent=1 // pred_region
      _
    $region9: #{tpu_custom_call.1} parent=1 // pred_fallthru
      _
    // Predicated region
    $region10: #{tpu_custom_call.1} parent=1 // pred_check
      _
    $region11: #{tpu_custom_call.1} parent=1 // pred_check_branch
      %20 = sbr.rel (0) target = $region13
    $region12: #{tpu_custom_call.1} parent=1 // pred_region
      _
    $region13: #{tpu_custom_call.1} parent=1 // pred_fallthru
      _
    // Predicated region
    $region14: #{tpu_custom_call.1} parent=1 // pred_check
      _
    $region15: #{tpu_custom_call.1} parent=1 // pred_check_branch
      %22 = sbr.rel (0) target = $region17
    $region16: #{tpu_custom_call.1} parent=1 // pred_region
      _
    $region17: #{tpu_custom_call.1} parent=1 // pred_fallthru
      _
    // Predicated region
    $region18: #{tpu_custom_call.1} parent=1 // pred_check
      _
    $region19: #{tpu_custom_call.1} parent=1 // pred_check_branch
      %24 = sbr.rel (0) target = $region21
    $region20: #{tpu_custom_call.1} parent=1 // pred_region
      _
    $region21: #{tpu_custom_call.1} parent=1 // pred_fallthru
      _
    // Predicated region
    $region22: #{tpu_custom_call.1} parent=1 // pred_check
      _
    $region23: #{tpu_custom_call.1} parent=1 // pred_check_branch
      %26 = sbr.rel (0) target = $region25
    $region24: #{tpu_custom_call.1} parent=1 // pred_region
      _
    $region25: #{tpu_custom_call.1} parent=1 // pred_fallthru
      _
    // Predicated region
    $region26: #{tpu_custom_call.1} parent=1 // pred_check
      _
    $region27: #{tpu_custom_call.1} parent=1 // pred_check_branch
      %28 = sbr.rel (0) target = $region29
    $region28: #{tpu_custom_call.1} parent=1 // pred_region
      _
    $region29: #{tpu_custom_call.1} parent=1 // pred_fallthru
      _
    %v30 = vld [vmem:[%s0] sm:$0xff]
    %v31 = vpack.c.bf16 %v30, %v30
    %v32 = vld [vmem:[%s1] sm:$0xf]
    %v33 = vld [vmem:[%s1 + $0x4] sm:$0xf]
    %v34 = vld [vmem:[%s1 + $0x8] sm:$0xf]
    %v35 = vld [vmem:[%s1 + $0xc] sm:$0xf]
    %v36 = vld [vmem:[%s1 + $0x10] sm:$0xf]
    %v37 = vld [vmem:[%s1 + $0x14] sm:$0xf]
    %v38 = vld [vmem:[%s1 + $0x18] sm:$0x1]
    %v39 = vld [vmem:[%s2] sm:$0x1]
    %v41 = vlaneseq
    %v42 = vshrl.u32 %v41, 7
    %v43 = vsub.s32 0, %v42
    %v44 = vrot.slane %v39, %v43
    %v53 = vunpack.c.l.b16 %v32
    %v54 = vunpack.c.l.b16 %v33
    %v55 = vunpack.c.l.b16 %v34
    %v56 = vunpack.c.l.b16 %v35
    %v57 = vunpack.c.l.b16 %v36
    %v58 = vunpack.c.l.b16 %v37
    %v59 = vunpack.c.l.b16 %v38
    %v60 = vpack.c.b16 %v54, %v53
    %v61 = vpack.c.b16 %v56, %v55
    %v62 = vpack.c.b16 %v58, %v57
    %v63 = vpack.c.b16 %v59, %v59
    %vm67 = vcmask 408576
    %v69 = vsel %vm67, %v31, 0
    %vm71 = vcmask 1040384
    %v73 = vsel %vm71, %v63, 0
    %75 = vmatprep.subr.bf16.mxu0 0
    %76 = vmatpush1.bf16.msra.mxu0 0
    %77 = vmatprep.subr.bf16.mxu0 0
    %78 = vmatpush1.bf16.msra.mxu0 0
    %79 = vmatprep.subr.bf16.mxu0 0
    %80 = vmatpush1.bf16.msra.mxu0 0
    %81 = vmatprep.subr.bf16.mxu0 0
    %82 = vmatpush1.bf16.msra.mxu0 0
    %83 = vmatprep.subr.bf16.mxu0 0
    %84 = vmatpush1.bf16.msra.mxu0 %v73
    %85 = vmatprep.subr.bf16.mxu0 0
    %86 = vmatpush1.bf16.msra.mxu0 %v62
    %87 = vmatprep.subr.bf16.mxu0 0
    %88 = vmatpush1.bf16.msra.mxu0 %v61
    %89 = vmatprep.subr.bf16.mxu0 0
    %90 = vmatpush1.bf16.msra.mxu0 %v60
    %91 = vmatprep.subr.bf16.mxu0 0
    %92 = vmatpush2.bf16.msra.mxu0 0
    %93 = vmatprep.subr.bf16.mxu0 0
    %94 = vmatpush2.bf16.msra.mxu0 0
    %95 = vmatprep.subr.bf16.mxu0 0
    %96 = vmatpush2.bf16.msra.mxu0 0
    %97 = vmatprep.subr.bf16.mxu0 0
    %98 = vmatpush2.bf16.msra.mxu0 0
    %99 = vmatprep.subr.bf16.mxu0 0
    %100 = vmatpush2.bf16.msra.mxu0 0
    %101 = vmatprep.subr.bf16.mxu0 0
    %102 = vmatpush2.bf16.msra.mxu0 0
    %103 = vmatprep.subr.bf16.mxu0 0
    %104 = vmatpush2.bf16.msra.mxu0 0
    %105 = vmatprep.subr.bf16.mxu0 0
    %106 = vmatpush2.bf16.msra.mxu0 0
    %107 = vmatprep.mubr.bf16.mxu0 0
    %108 = vmatmul.mubr.bf16.gmra.mxu0 %v69
    %v109 = vpop.f32.mrf.mxu0
    %v110 = vadd.f32 %v44, %v109
    %v111 = vpop.f32.mrf.mxu0
    %v112 = vpop.f32.mrf.mxu0
    %v113 = vpop.f32.mrf.mxu0
    %114 = vdwg.mxu0
    %v115 = vmax.f32 %v110, 0.0
    %v116 = vld [vmem:[%s3] sm:$0xf]
    %v117 = vld [vmem:[%s3 + $0x4] sm:$0xf]
    %v118 = vld [vmem:[%s3 + $0x8] sm:$0xf]
    %v119 = vld [vmem:[%s3 + $0xc] sm:$0xf]
    %v120 = vld [vmem:[%s3 + $0x10] sm:$0xf]
    %v121 = vld [vmem:[%s3 + $0x14] sm:$0xf]
    %v122 = vld [vmem:[%s3 + $0x18] sm:$0xf]
    %v123 = vld [vmem:[%s3 + $0x1c] sm:$0xf]
    %v124 = vpack.c.bf16 %v115, %v115
    %v125 = vld [vmem:[%s4] sm:$0xff]
    %v126 = vld [vmem:[%s4 + $0x8] sm:$0xff]
    %v127 = vld [vmem:[%s4 + $0x10] sm:$0xff]
    %v128 = vld [vmem:[%s4 + $0x18] sm:$0xff]
    %v129 = vld [vmem:[%s4 + $0x20] sm:$0xff]
    %v130 = vld [vmem:[%s4 + $0x28] sm:$0xff]
    %v131 = vld [vmem:[%s4 + $0x30] sm:$0xff]
    %v132 = vld [vmem:[%s4 + $0x38] sm:$0xff]
    %134 = vset.pattern.permute.xlu0 0
    %135 = vperm.xlu0 %134, %v125
    %v136 = vpop.permute.xlu0 %135
    %139 = vset.pattern.permute.xlu0 0
    %140 = vperm.xlu0 %139, %v126
    %v141 = vpop.permute.xlu0 %140
    %144 = vset.pattern.permute.xlu0 0
    %145 = vperm.xlu0 %144, %v127
    %v146 = vpop.permute.xlu0 %145
    %149 = vset.pattern.permute.xlu0 0
    %150 = vperm.xlu0 %149, %v128
    %v151 = vpop.permute.xlu0 %150
    %154 = vset.pattern.permute.xlu0 0
    %155 = vperm.xlu0 %154, %v129
    %v156 = vpop.permute.xlu0 %155
    %159 = vset.pattern.permute.xlu0 0
    %160 = vperm.xlu0 %159, %v130
    %v161 = vpop.permute.xlu0 %160
    %164 = vset.pattern.permute.xlu0 0
    %165 = vperm.xlu0 %164, %v131
    %v166 = vpop.permute.xlu0 %165
    %169 = vset.pattern.permute.xlu0 0
    %170 = vperm.xlu0 %169, %v132
    %v171 = vpop.permute.xlu0 %170
    %v181 = vunpack.c.l.b16 %v116
    %v182 = vunpack.c.l.b16 %v117
    %v183 = vunpack.c.l.b16 %v118
    %v184 = vunpack.c.l.b16 %v119
    %v185 = vunpack.c.l.b16 %v120
    %v186 = vunpack.c.l.b16 %v121
    %v187 = vunpack.c.l.b16 %v122
    %v188 = vunpack.c.l.b16 %v123
    %v189 = vpack.c.b16 %v182, %v181
    %v190 = vpack.c.b16 %v184, %v183
    %v191 = vpack.c.b16 %v186, %v185
    %v192 = vpack.c.b16 %v188, %v187
    %197 = vmatprep.subr.bf16.mxu0 0
    %198 = vmatpush1.bf16.xpose.msra.mxu0 0
    %199 = vmatprep.subr.bf16.mxu0 0
    %200 = vmatpush1.bf16.xpose.msra.mxu0 0
    %201 = vmatprep.subr.bf16.mxu0 0
    %202 = vmatpush1.bf16.xpose.msra.mxu0 0
    %203 = vmatprep.subr.bf16.mxu0 0
    %204 = vmatpush1.bf16.xpose.msra.mxu0 0
    %205 = vmatprep.subr.bf16.mxu0 0
    %206 = vmatpush1.bf16.xpose.msra.mxu0 0
    %207 = vmatprep.subr.bf16.mxu0 0
    %208 = vmatpush1.bf16.xpose.msra.mxu0 0
    %209 = vmatprep.subr.bf16.mxu0 0
    %210 = vmatpush1.bf16.xpose.msra.mxu0 0
    %211 = vmatprep.subr.bf16.mxu0 0
    %212 = vmatpush1.bf16.xpose.msra.mxu0 %v124
    %213 = vmatprep.subr.bf16.mxu0 0
    %214 = vmatpush2.bf16.xpose.msra.mxu0 0
    %215 = vmatprep.subr.bf16.mxu0 0
    %216 = vmatpush2.bf16.xpose.msra.mxu0 0
    %217 = vmatprep.subr.bf16.mxu0 0
    %218 = vmatpush2.bf16.xpose.msra.mxu0 0
    %219 = vmatprep.subr.bf16.mxu0 0
    %220 = vmatpush2.bf16.xpose.msra.mxu0 0
    %221 = vmatprep.subr.bf16.mxu0 0
    %222 = vmatpush2.bf16.xpose.msra.mxu0 0
    %223 = vmatprep.subr.bf16.mxu0 0
    %224 = vmatpush2.bf16.xpose.msra.mxu0 0
    %225 = vmatprep.subr.bf16.mxu0 0
    %226 = vmatpush2.bf16.xpose.msra.mxu0 0
    %227 = vmatprep.subr.bf16.mxu0 0
    %228 = vmatpush2.bf16.xpose.msra.mxu0 0
    %229 = vmatprep.mubr.bf16.mxu0 0
    %230 = vmatmul.mubr.bf16.gmra.mxu0 %v189
    %v231 = vpop.f32.mrf.mxu0
    %v232 = vadd.f32 %v136, %v231
    %v233 = vpop.f32.mrf.mxu0
    %v234 = vpop.f32.mrf.mxu0
    %v235 = vadd.f32 %v141, %v234
    %v236 = vpop.f32.mrf.mxu0
    %237 = vmatprep.mubr.bf16.mxu0 0
    %238 = vmatmul.mubr.bf16.gmra.mxu0 %v190
    %v239 = vpop.f32.mrf.mxu0
    %v240 = vadd.f32 %v146, %v239
    %v241 = vpop.f32.mrf.mxu0
    %v242 = vpop.f32.mrf.mxu0
    %v243 = vadd.f32 %v151, %v242
    %v244 = vpop.f32.mrf.mxu0
    %245 = vmatprep.mubr.bf16.mxu0 0
    %246 = vmatmul.mubr.bf16.gmra.mxu0 %v191
    %v247 = vpop.f32.mrf.mxu0
    %v248 = vadd.f32 %v156, %v247
    %v249 = vpop.f32.mrf.mxu0
    %v250 = vpop.f32.mrf.mxu0
    %v251 = vadd.f32 %v161, %v250
    %v252 = vpop.f32.mrf.mxu0
    %253 = vmatprep.mubr.bf16.mxu0 0
    %254 = vmatmul.mubr.bf16.gmra.mxu0 %v192
    %v255 = vpop.f32.mrf.mxu0
    %v256 = vadd.f32 %v166, %v255
    %v257 = vpop.f32.mrf.mxu0
    %v258 = vpop.f32.mrf.mxu0
    %v259 = vadd.f32 %v171, %v258
    %v260 = vpop.f32.mrf.mxu0
    %261 = vdwg.mxu0
    %v262 = vmax.f32 %v232, 0.0
    %v263 = vmax.f32 %v235, 0.0
    %v264 = vmax.f32 %v240, 0.0
    %v265 = vmax.f32 %v243, 0.0
    %v266 = vmax.f32 %v248, 0.0
    %v267 = vmax.f32 %v251, 0.0
    %v268 = vmax.f32 %v256, 0.0
    %v269 = vmax.f32 %v259, 0.0
    %v270 = vld [vmem:[%s5] sm:$0xff]
    %v271 = vld [vmem:[%s5 + $0x8] sm:$0xff]
    %v272 = vld [vmem:[%s5 + $0x10] sm:$0xff]
    %v273 = vld [vmem:[%s5 + $0x18] sm:$0xff]
    %v274 = vld [vmem:[%s5 + $0x20] sm:$0xff]
    %v275 = vld [vmem:[%s5 + $0x28] sm:$0xff]
    %v276 = vld [vmem:[%s5 + $0x30] sm:$0xff]
    %v277 = vld [vmem:[%s5 + $0x38] sm:$0xff]
    %279 = vset.pattern.permute.xlu0 0
    %280 = vperm.xlu0 %279, %v270
    %v281 = vpop.permute.xlu0 %280
    %284 = vset.pattern.permute.xlu0 0
    %285 = vperm.xlu0 %284, %v271
    %v286 = vpop.permute.xlu0 %285
    %289 = vset.pattern.permute.xlu0 0
    %290 = vperm.xlu0 %289, %v272
    %v291 = vpop.permute.xlu0 %290
    %294 = vset.pattern.permute.xlu0 0
    %295 = vperm.xlu0 %294, %v273
    %v296 = vpop.permute.xlu0 %295
    %299 = vset.pattern.permute.xlu0 0
    %300 = vperm.xlu0 %299, %v274
    %v301 = vpop.permute.xlu0 %300
    %304 = vset.pattern.permute.xlu0 0
    %305 = vperm.xlu0 %304, %v275
    %v306 = vpop.permute.xlu0 %305
    %309 = vset.pattern.permute.xlu0 0
    %310 = vperm.xlu0 %309, %v276
    %v311 = vpop.permute.xlu0 %310
    %314 = vset.pattern.permute.xlu0 0
    %315 = vperm.xlu0 %314, %v277
    %v316 = vpop.permute.xlu0 %315
    %v318 = vmul.f32 %v262, %v281
    %v319 = vmul.f32 %v263, %v286
    %v320 = vmul.f32 %v264, %v291
    %v321 = vmul.f32 %v265, %v296
    %v322 = vmul.f32 %v266, %v301
    %v323 = vmul.f32 %v267, %v306
    %v324 = vmul.f32 %v268, %v311
    %v325 = vmul.f32 %v269, %v316
    %vm326 = vcmask 64512
    %v327 = vsel %vm326, %v318, 0.0
    %v328 = vsel %vm326, %v319, 0.0
    %v329 = vadd.f32 %v327, %v328
    %v330 = vsel %vm326, %v320, 0.0
    %v331 = vadd.f32 %v329, %v330
    %v332 = vsel %vm326, %v321, 0.0
    %v333 = vadd.f32 %v331, %v332
    %v334 = vsel %vm326, %v322, 0.0
    %v335 = vadd.f32 %v333, %v334
    %v336 = vsel %vm326, %v323, 0.0
    %v337 = vadd.f32 %v335, %v336
    %v338 = vsel %vm326, %v324, 0.0
    %v339 = vadd.f32 %v337, %v338
    %v340 = vsel %vm326, %v325, 0.0
    %v341 = vadd.f32 %v339, %v340
    %v342 = vrot.slane %v341, 4
    %v343 = vadd.f32 %v341, %v342
    %v344 = vrot.slane %v343, 2
    %v345 = vadd.f32 %v343, %v344
    %v346 = vrot.slane %v345, 1
    %v347 = vadd.f32 %v345, %v346
    %v348 = vld [vmem:[#allocation2] sm:$0x1]
    %350 = vset.pattern.permute.xlu0 0
    %351 = vperm.xlu0 %350, %v348
    %v352 = vpop.permute.xlu0 %351
    %v354 = vlaneseq
    %v355 = vshrl.u32 %v354, 7
    %v356 = vsub.s32 0, %v355
    %v357 = vrot.slane %v352, %v356
    %v358 = vadd.f32 %v347, %v357
    %v359 = vxor.u32 %v358, 2147483648
    %v360 = vmul.f32 %v359, 1.442695
    %v361 = vpow.pop %v360
    %v362 = vadd.f32 %v361, 1.0
    %v363 = vrcp.pop %v362
    %v364 = vmul.f32 1.0, %v363
    %vm365 = vcmask 57344
    %366 = vst.msk [vmem:[#allocation3] sm:$0x1] %vm365, %v364
    // Predicated region
    $region30: #{tpu_custom_call.1} parent=1 // pred_check
      _
    $region31: #{tpu_custom_call.1} parent=1 // pred_check_branch
      %368 = sbr.rel (0) target = $region33
    $region32: #{tpu_custom_call.1} parent=1 // pred_region
      %s370 = ssub.s32 16, 16
      %371 = vsyncadd [#allocation4], %s370
      %s373 = sshll.u32 [#allocation3], 4
      %s374 = int_to_ptr.vmem [resolvable:$true] %s373
      %376 = dma.vmem_to_hbm [thread:$0]  %s374, 16, %s7, [#allocation4]
    $region33: #{tpu_custom_call.1} parent=1 // pred_fallthru
      _
    // Predicated region
    $region34: #{tpu_custom_call.1} parent=1 // pred_check
      _
    $region35: #{tpu_custom_call.1} parent=1 // pred_check_branch
      %378 = sbr.rel (0) target = $region37
    $region36: #{tpu_custom_call.1} parent=1 // pred_region
      %379 = dma.done [#allocation4], 16
    $region37: #{tpu_custom_call.1} parent=1 // pred_fallthru
      _
    %380 = vsyncpa [#allocation4], 1

</llo_original>
